<compile_context>
chip_gen: v5e
topology: v5e:2x2
jax: 0.10.0
libtpu: 0.0.40
codegen_flags: <defaults>
</compile_context>

<pallas_src>
import jax
import jax.numpy as jnp
from jax.experimental import pallas as pl
from jax.experimental.pallas import tpu as pltpu


def _copy_kernel(x_ref, o_ref):
    # Pure copy: squeeze does not permute data, only drops size-1 dims.
    o_ref[...] = x_ref[...]


def _squeezed_shape(shape):
    """Output shape following the torch module's forward logic."""
    shape = tuple(shape)
    if len(shape) == 0:
        return shape
    if shape[0] == 1:
        return (1,) + tuple(d for d in shape[1:] if d != 1)
    return tuple(d for d in shape if d != 1)


def squeeze(x):
    """JAX/Pallas equivalent of the PyTorch Squeeze module forward."""
    if x.ndim == 0:
        return x

    out_shape = _squeezed_shape(x.shape)
    if out_shape == tuple(x.shape):
        # Nothing to squeeze: metadata-only no-op, skip the kernel entirely.
        return x

    n = x.size
    if n == 0:
        return x.reshape(out_shape)

    itemsize = jnp.dtype(x.dtype).itemsize

    # Pick a lane-dense column width (large multiple of 128) dividing n.
    cols = 0
    for c in (4096, 2048, 1024, 512, 256, 128):
        if n % c == 0:
            cols = c
            break

    bytes_accessed = 2 * n * itemsize
    cost = pl.CostEstimate(flops=0, transcendentals=0,
                           bytes_accessed=bytes_accessed)
    cparams = pltpu.CompilerParams(
        dimension_semantics=("parallel",),
        vmem_limit_bytes=32 * 1024 * 1024,
    )

    if cols == 0:
        # Rare fallback: element count not divisible by 128. 1-D tiled copy;
        # a partial edge block (if any) is handled by Pallas masking.
        flat = x.reshape(n)
        t = min(n, 512 * 1024)  # elements per block (<= 2 MiB for f32)
        out = pl.pallas_call(
            _copy_kernel,
            out_shape=jax.ShapeDtypeStruct((n,), x.dtype),
            grid=(pl.cdiv(n, t),),
            in_specs=[pl.BlockSpec((t,), lambda i: (i,))],
            out_specs=pl.BlockSpec((t,), lambda i: (i,)),
            compiler_params=cparams,
            cost_estimate=cost,
        )(flat)
        return out.reshape(out_shape)

    rows = n // cols
    x2 = x.reshape(rows, cols)

    # Dtype-aware sublane multiple: 8 (f32) / 16 (bf16) / 32 (int8/fp8).
    sub = 8 * max(1, 4 // itemsize)
    # ~2 MiB tiles: large enough for ~85% of HBM roofline, small enough that
    # double-buffered input + output (4 buffers) fits every chip's VMEM.
    target_bytes = 2 * 1024 * 1024
    tr = (target_bytes // (cols * itemsize)) // sub * sub
    tr = max(sub, tr)
    tr = min(tr, rows)  # if tr == rows the block equals the full dim

    out2 = pl.pallas_call(
        _copy_kernel,
        out_shape=jax.ShapeDtypeStruct((rows, cols), x.dtype),
        grid=(pl.cdiv(rows, tr),),
        in_specs=[pl.BlockSpec((tr, cols), lambda i: (i, 0))],
        out_specs=pl.BlockSpec((tr, cols), lambda i: (i, 0)),
        compiler_params=cparams,
        cost_estimate=cost,
    )(x2)
    return out2.reshape(out_shape)


if __name__ == "__main__":
    key = jax.random.PRNGKey(0)

    # Case 1: leading dim == 1 -> keep dim 0, drop the other size-1 dim.
    x1 = jax.random.normal(key, (1, 4, 1, 16, 16), dtype=jnp.float32)
    y1 = jax.block_until_ready(squeeze(x1))
    ref1 = x1.reshape(1, 4, 16, 16)
    assert y1.shape == (1, 4, 16, 16), y1.shape
    assert jnp.array_equal(y1, ref1), "mismatch in shape[0]==1 branch"

    # Case 2: leading dim != 1 -> torch .squeeze(), drop all size-1 dims.
    x2 = jax.random.normal(jax.random.PRNGKey(0), (2, 1, 16, 1, 16),
                           dtype=jnp.float32)
    y2 = jax.block_until_ready(squeeze(x2))
    ref2 = x2.reshape(2, 16, 16)
    assert y2.shape == (2, 16, 16), y2.shape
    assert jnp.array_equal(y2, ref2), "mismatch in else branch"

    # Case 3: slightly larger input to exercise the multi-tile grid path.
    x3 = jax.random.normal(jax.random.PRNGKey(0), (1, 256, 1, 32, 128),
                           dtype=jnp.float32)
    y3 = jax.block_until_ready(squeeze(x3))
    ref3 = x3.reshape(1, 256, 32, 128)
    assert y3.shape == (1, 256, 32, 128), y3.shape
    assert jnp.array_equal(y3, ref3), "mismatch in tiled path"

    # Case 4: nothing to squeeze -> fast path returns the input unchanged.
    x4 = jax.random.normal(jax.random.PRNGKey(0), (2, 4, 16, 16),
                           dtype=jnp.float32)
    y4 = squeeze(x4)
    assert y4.shape == (2, 4, 16, 16)
    assert jnp.array_equal(y4, x4)

    print("KERNEL_OK")
</pallas_src>

<mosaic_0001>
module attributes {stable_mosaic.version = 11 : i64} {
  func.func @_copy_kernel(%arg0: i32, %arg1: memref<1x1024xf32, #tpu.memory_space<vmem>>, %arg2: memref<1x1024xf32, #tpu.memory_space<vmem>>) attributes {dimension_semantics = [#tpu.dimension_semantics<parallel>], iteration_bounds = array<i64: 1>, scalar_prefetch = 0 : i64, scratch_operands = 0 : i64, tpu.core_type = #tpu.core_type<tc>, window_params = [{transform_indices = @transform_0, window_bounds = array<i64: 1, 1024>}, {transform_indices = @transform_1, window_bounds = array<i64: 1, 1024>}]} {
    %c0 = arith.constant 0 : index
    %c0_0 = arith.constant 0 : index
    %0 = vector.load %arg1[%c0, %c0_0] : memref<1x1024xf32, #tpu.memory_space<vmem>>, vector<1x1024xf32>
    %c0_1 = arith.constant 0 : index
    %c0_2 = arith.constant 0 : index
    %1 = vector.load %arg2[%c0_1, %c0_2] : memref<1x1024xf32, #tpu.memory_space<vmem>>, vector<1x1024xf32>
    tpu.vector_store %arg2[%c0_1, %c0_2], %0 {strides = array<i32>} : memref<1x1024xf32, #tpu.memory_space<vmem>>, vector<1x1024xf32>,
    return
  }
  func.func @transform_0(%arg0: i32) -> (i32, i32) {
    %c0_i32 = arith.constant 0 : i32
    %c0_i32_0 = arith.constant 0 : i32
    return %arg0, %c0_i32 : i32, i32
  }
  func.func @transform_1(%arg0: i32) -> (i32, i32) {
    %c0_i32 = arith.constant 0 : i32
    %c0_i32_0 = arith.constant 0 : i32
    return %arg0, %c0_i32 : i32, i32
  }
}

</mosaic_0001>

<llo_original>
// kernel: tpu_custom_call.1
$region0: #{tpu_custom_call.1}
  #allocation0 [shape = 'u32[]', space=smem, size = 0x4, offset = 0x4, fixed_abs, tag = 'smem constant byte address 0x4 - core index']
  #allocation1 [shape = 'u32[72,128]{1,0:T(1,128)}', space=vmem, size = 0x9000, scoped, tag = 'internal scratch']
  %s0 = inlined_call_operand.hbm [shape: f32[1,1024], index: 0, kind: input, shape index: {}]
  %s1 = inlined_call_operand.hbm [shape: f32[1,1024], index: 1, kind: output, shape index: {}]
  %s2 = sld [smem:[#allocation0]]
  $region18: #{tpu_custom_call.1} parent=0
    _
  %s4 = ssub.s32 1, %s2
  %s5 = scalar_select 0, %s4, %s2
  $region1: #{tpu_custom_call.1} parent=0
    #allocation2 [shape = 'u8[4096]{0}', space=vmem, size = 0x1000, scoped, tag = 'input window, operand 0, single buffered']
    #allocation3 [shape = 's32[1]{0}', space=sflag, size = 0x4, scoped, tag = 'scoped memory for tpu_custom_call.1']
    #allocation4 [shape = 's32[1]{0}', space=sflag, size = 0x4, scoped, tag = 'scoped memory for tpu_custom_call.1']
    #allocation5 [shape = 'u8[4096]{0}', space=vmem, size = 0x1000, scoped, tag = 'output window, operand 0, single buffered']
    %6 = vsyncpa [#allocation3], 0
    %7 = vsyncpa [#allocation4], 0
    // Predicated region
    $region2: #{tpu_custom_call.1} parent=1 // pred_check
      _
    $region3: #{tpu_custom_call.1} parent=1 // pred_check_branch
      %9 = sbr.rel (0) target = $region5
    $region4: #{tpu_custom_call.1} parent=1 // pred_region
      %11 = vsyncadd [#allocation3], 0
      %s13 = sshll.u32 %s0, 4
      %s14 = int_to_ptr.hbm [resolvable:$true] %s13
      %s15 = sshll.u32 [#allocation2], 4
      %s16 = int_to_ptr.vmem [resolvable:$true] %s15
      %18 = dma.hbm_to_vmem [thread:$0]  %s14, 128, %s16, [#allocation3]
    $region5: #{tpu_custom_call.1} parent=1 // pred_fallthru
      _
    // Predicated region
    $region6: #{tpu_custom_call.1} parent=1 // pred_check
      _
    $region7: #{tpu_custom_call.1} parent=1 // pred_check_branch
      %20 = sbr.rel (0) target = $region9
    $region8: #{tpu_custom_call.1} parent=1 // pred_region
      %22 = dma.done [#allocation3], 128
    $region9: #{tpu_custom_call.1} parent=1 // pred_fallthru
      _
    %v23 = vld [vmem:[#allocation2] sm:$0xff]
    %24 = vst [vmem:[#allocation5] sm:$0xff] %v23
    // Predicated region
    $region10: #{tpu_custom_call.1} parent=1 // pred_check
      _
    $region11: #{tpu_custom_call.1} parent=1 // pred_check_branch
      %26 = sbr.rel (0) target = $region13
    $region12: #{tpu_custom_call.1} parent=1 // pred_region
      %28 = vsyncadd [#allocation4], 0
      %s30 = sshll.u32 [#allocation5], 4
      %s31 = int_to_ptr.vmem [resolvable:$true] %s30
      %s32 = sshll.u32 %s1, 4
      %s33 = int_to_ptr.hbm [resolvable:$true] %s32
      %35 = dma.vmem_to_hbm [thread:$0]  %s31, 128, %s33, [#allocation4]
    $region13: #{tpu_custom_call.1} parent=1 // pred_fallthru
      _
    // Predicated region
    $region14: #{tpu_custom_call.1} parent=1 // pred_check
      _
    $region15: #{tpu_custom_call.1} parent=1 // pred_check_branch
      %37 = sbr.rel (0) target = $region17
    $region16: #{tpu_custom_call.1} parent=1 // pred_region
      %39 = dma.done [#allocation4], 128
    $region17: #{tpu_custom_call.1} parent=1 // pred_fallthru
      _
    %40 = vsyncpa [#allocation3], 1
    %41 = vsyncpa [#allocation4], 1

</llo_original>
